<compile_context>
chip_gen: v7x
topology: tpu7x:2x2x1
jax: 0.10.0
libtpu: 0.0.40
codegen_flags: <defaults>
</compile_context>

<pallas_src>
import functools

import jax
import jax.numpy as jnp
from jax.experimental import pallas as pl
from jax.experimental.pallas import tpu as pltpu


def _gru_block_kernel(x_ref, h0_ref, wgx_ref, wgh_ref, bg_ref, wo_ref, bo_ref,
                      out_ref, h_ref, *, time_block, batch, hidden_size):
    """One grid step == `time_block` GRU timesteps.

    x_ref:  (Tb*B, I)   inputs of this time block (time-major rows)
    h_ref:  (B, H)      carried hidden state (constant-index output block)
    out_ref:(Tb*B, Opad) log-softmax outputs of this block (lane-dense)
    """
    Tb, B, H = time_block, batch, hidden_size

    # Initialize the carried hidden state once; it stays resident in VMEM
    # across grid steps and is written back to HBM a single time at the end.
    @pl.when(pl.program_id(0) == 0)
    def _():
        h_ref[...] = h0_ref[...]

    # ---- Prologue (off the serial chain): input projection for the whole
    # block in one wide MXU matmul, bias folded in.
    gx = (jnp.dot(x_ref[...], wgx_ref[...], preferred_element_type=jnp.float32)
          + bg_ref[...])                                   # (Tb*B, 2H)

    # ---- Serial recurrence: only the h-dependent matmul + elementwise math.
    wgh = wgh_ref[...]
    h = h_ref[...]
    hs = []
    for t in range(Tb):                    # fully unrolled, Tb is small/static
        gates = gx[t * B:(t + 1) * B, :] + jnp.dot(
            h, wgh, preferred_element_type=jnp.float32)    # (B, 2H)
        reset = jax.nn.sigmoid(gates[:, :H])
        memory = jnp.tanh(gates[:, H:])
        # NOTE: the reference module also computes an update gate whose value
        # is never used in the forward output; that dead matmul/DMA is omitted.
        h = (1.0 - reset) * h + reset * memory
        hs.append(h)
    h_ref[...] = h                         # carry to next grid step

    # ---- Epilogue (deferred output head): one matmul + one log-softmax for
    # the whole block, single lane-dense store.
    h_all = jnp.concatenate(hs, axis=0)                    # (Tb*B, H)
    logits = (jnp.dot(h_all, wo_ref[...], preferred_element_type=jnp.float32)
              + bo_ref[...])                               # (Tb*B, Opad)
    mx = jnp.max(logits, axis=1, keepdims=True)
    shifted = logits - mx
    lse = jnp.log(jnp.sum(jnp.exp(shifted), axis=1, keepdims=True))
    out_ref[...] = shifted - lse


@functools.partial(jax.jit, static_argnames=("time_block",))
def gru_forward_sequence(xs, hidden, params, time_block=None):
    """Run the GRU over a whole sequence in one pallas_call.

    xs: (T, B, input_size), hidden: (B, hidden_size).
    Returns (log_softmax outputs (T, B, output_size), final hidden (B, H)).
    """
    T, B, I = xs.shape
    H = hidden.shape[1]
    O = params["wo"].shape[1]

    # Gate split gates[:, :H] / gates[:, H:] must land on a lane boundary.
    assert H % 128 == 0, "hidden_size must be a multiple of 128"

    if time_block is None:
        time_block = T if T <= 16 else 8
    assert T % time_block == 0, "seq_len must be divisible by time_block"
    nb = T // time_block

    # Pad the output head to a lane-dense width; pad columns get a -1e30 bias
    # so max / sum(exp) over the real columns are unaffected.
    Opad = -(-O // 128) * 128
    if Opad != O:
        wo_p = jnp.zeros((H, Opad), jnp.float32).at[:, :O].set(params["wo"])
        bo_p = jnp.full((1, Opad), -1e30, jnp.float32).at[:, :O].set(params["bo"])
    else:
        wo_p, bo_p = params["wo"], params["bo"]

    xs_flat = xs.reshape(T * B, I)         # time-major rows, no in-kernel reshape

    kernel = functools.partial(_gru_block_kernel,
                               time_block=time_block, batch=B, hidden_size=H)

    grid_spec = pltpu.PrefetchScalarGridSpec(
        num_scalar_prefetch=0,
        grid=(nb,),
        in_specs=[
            pl.BlockSpec((time_block * B, I), lambda i: (i, 0)),  # x block
            pl.BlockSpec((B, H), lambda i: (0, 0)),               # h0 (read once)
            pl.BlockSpec((I, 2 * H), lambda i: (0, 0)),           # gate W, x-part
            pl.BlockSpec((H, 2 * H), lambda i: (0, 0)),           # gate W, h-part
            pl.BlockSpec((1, 2 * H), lambda i: (0, 0)),           # gate bias
            pl.BlockSpec((H, Opad), lambda i: (0, 0)),            # head W (padded)
            pl.BlockSpec((1, Opad), lambda i: (0, 0)),            # head b (padded)
        ],
        out_specs=(
            pl.BlockSpec((time_block * B, Opad), lambda i: (i, 0)),  # log-probs
            pl.BlockSpec((B, H), lambda i: (0, 0)),                  # final hidden
        ),
    )

    out_flat, h_last = pl.pallas_call(
        kernel,
        out_shape=(
            jax.ShapeDtypeStruct((T * B, Opad), jnp.float32),
            jax.ShapeDtypeStruct((B, H), jnp.float32),
        ),
        grid_spec=grid_spec,
        compiler_params=pltpu.CompilerParams(
            dimension_semantics=("arbitrary",)),   # recurrence is sequential
    )(xs_flat, hidden,
      params["wgx"], params["wgh"], params["bg"], wo_p, bo_p)

    out = out_flat.reshape(T, B, Opad)[..., :O]
    return out, h_last


def gru_forward(x, hidden, params):
    """Single GRU step (same signature/semantics as the PyTorch forward)."""
    out_seq, h_new = gru_forward_sequence(x[None], hidden, params)
    return out_seq[0], h_new


def init_params(key, input_size, hidden_size, output_size):
    """torch.nn.Linear-style U(-1/sqrt(fan_in), +) init, packed for the kernel."""
    def linear(k, fan_in, fan_out):
        kw, kb = jax.random.split(k)
        bound = 1.0 / jnp.sqrt(fan_in)
        w = jax.random.uniform(kw, (fan_in, fan_out), jnp.float32, -bound, bound)
        b = jax.random.uniform(kb, (1, fan_out), jnp.float32, -bound, bound)
        return w, b

    k_r, k_m, k_o = jax.random.split(key, 3)
    ih = input_size + hidden_size
    wr, br = linear(k_r, ih, hidden_size)    # reset gate
    wm, bm = linear(k_m, ih, hidden_size)    # memory proposal
    wo, bo = linear(k_o, hidden_size, output_size)
    # Update-gate parameters of the reference module are dead (unused in the
    # forward output) and are intentionally not materialized / DMA'd.

    wg = jnp.concatenate([wr, wm], axis=1)   # (I+H, 2H): [reset | memory]
    return dict(
        wgx=wg[:input_size],                 # (I, 2H)
        wgh=wg[input_size:],                 # (H, 2H)
        bg=jnp.concatenate([br, bm], axis=1),
        wo=wo, bo=bo,
    )


def reference_step(x, h, p):
    """Pure-JAX reference of the PyTorch forward (one step)."""
    H = h.shape[1]
    gates = x @ p["wgx"] + h @ p["wgh"] + p["bg"]
    reset = jax.nn.sigmoid(gates[:, :H])
    memory = jnp.tanh(gates[:, H:])
    h_new = (1.0 - reset) * h + reset * memory
    logits = h_new @ p["wo"] + p["bo"]
    return jax.nn.log_softmax(logits, axis=1), h_new


def reference_sequence(xs, h, p):
    outs = []
    for t in range(xs.shape[0]):
        o, h = reference_step(xs[t], h, p)
        outs.append(o)
    return jnp.stack(outs, 0), h


if __name__ == "__main__":
    # batch=8 fills the f32 sublane dimension (perf feedback: B>=8).
    input_size, hidden_size, output_size = 16, 128, 8
    batch, seq_len = 8, 8

    key = jax.random.PRNGKey(0)
    kx, kh, kp = jax.random.split(key, 3)

    xs = jax.random.normal(kx, (seq_len, batch, input_size), jnp.float32)
    h0 = jax.random.normal(kh, (batch, hidden_size), jnp.float32)
    params = init_params(kp, input_size, hidden_size, output_size)

    # Single-step forward (matches the PyTorch module's forward signature).
    out1, h1 = gru_forward(xs[0], h0, params)
    jax.block_until_ready((out1, h1))
    ref_out1, ref_h1 = reference_step(xs[0], h0, params)
    assert out1.shape == (batch, output_size)
    assert h1.shape == (batch, hidden_size)
    assert jnp.allclose(out1, ref_out1, atol=1e-4, rtol=1e-4)
    assert jnp.allclose(h1, ref_h1, atol=1e-4, rtol=1e-4)

    # Whole-sequence recurrence inside a single pallas_call.
    outs, hT = gru_forward_sequence(xs, h0, params)
    jax.block_until_ready((outs, hT))
    ref_outs, ref_hT = reference_sequence(xs, h0, params)
    assert outs.shape == (seq_len, batch, output_size)
    assert hT.shape == (batch, hidden_size)
    assert jnp.allclose(outs, ref_outs, atol=1e-4, rtol=1e-4)
    assert jnp.allclose(hT, ref_hT, atol=1e-4, rtol=1e-4)

    print("KERNEL_OK")
</pallas_src>

<mosaic_0001>
module attributes {stable_mosaic.version = 11 : i64} {
  func.func @_gru_block_kernel(%arg0: i32, %arg1: memref<8x16xf32, #tpu.memory_space<vmem>>, %arg2: memref<8x128xf32, #tpu.memory_space<vmem>>, %arg3: memref<16x256xf32, #tpu.memory_space<vmem>>, %arg4: memref<128x256xf32, #tpu.memory_space<vmem>>, %arg5: memref<1x256xf32, #tpu.memory_space<vmem>>, %arg6: memref<128x128xf32, #tpu.memory_space<vmem>>, %arg7: memref<1x128xf32, #tpu.memory_space<vmem>>, %arg8: memref<8x128xf32, #tpu.memory_space<vmem>>, %arg9: memref<8x128xf32, #tpu.memory_space<vmem>>) attributes {dimension_semantics = [#tpu.dimension_semantics<arbitrary>], iteration_bounds = array<i64: 1>, scalar_prefetch = 0 : i64, scratch_operands = 0 : i64, tpu.core_type = #tpu.core_type<tc>, window_params = [{transform_indices = @transform_0, window_bounds = array<i64: 8, 16>}, {pipeline_mode = #tpu.pipeline_mode<synchronous>, transform_indices = @transform_1, window_bounds = array<i64: 8, 128>}, {pipeline_mode = #tpu.pipeline_mode<synchronous>, transform_indices = @transform_2, window_bounds = array<i64: 16, 256>}, {pipeline_mode = #tpu.pipeline_mode<synchronous>, transform_indices = @transform_3, window_bounds = array<i64: 128, 256>}, {pipeline_mode = #tpu.pipeline_mode<synchronous>, transform_indices = @transform_4, window_bounds = array<i64: 1, 256>}, {pipeline_mode = #tpu.pipeline_mode<synchronous>, transform_indices = @transform_5, window_bounds = array<i64: 128, 128>}, {pipeline_mode = #tpu.pipeline_mode<synchronous>, transform_indices = @transform_6, window_bounds = array<i64: 1, 128>}, {transform_indices = @transform_7, window_bounds = array<i64: 8, 128>}, {pipeline_mode = #tpu.pipeline_mode<synchronous>, transform_indices = @transform_8, window_bounds = array<i64: 8, 128>}]} {
    %c0_i32 = arith.constant 0 : i32
    %0 = arith.cmpi eq, %arg0, %c0_i32 : i32
    %1 = arith.extui %0 : i1 to i32
    %c0_i32_0 = arith.constant 0 : i32
    %2 = arith.cmpi ne, %1, %c0_i32_0 : i32
    scf.if %2 {
      %c0_24 = arith.constant 0 : index
      %c0_25 = arith.constant 0 : index
      %43 = vector.load %arg2[%c0_24, %c0_25] : memref<8x128xf32, #tpu.memory_space<vmem>>, vector<8x128xf32>
      %c0_26 = arith.constant 0 : index
      %c0_27 = arith.constant 0 : index
      %44 = vector.load %arg9[%c0_26, %c0_27] : memref<8x128xf32, #tpu.memory_space<vmem>>, vector<8x128xf32>
      tpu.vector_store %arg9[%c0_26, %c0_27], %43 {strides = array<i32>} : memref<8x128xf32, #tpu.memory_space<vmem>>, vector<8x128xf32>,
    } else {
    }
    %c0 = arith.constant 0 : index
    %c0_1 = arith.constant 0 : index
    %3 = vector.load %arg1[%c0, %c0_1] : memref<8x16xf32, #tpu.memory_space<vmem>>, vector<8x16xf32>
    %c0_2 = arith.constant 0 : index
    %c0_3 = arith.constant 0 : index
    %4 = vector.load %arg3[%c0_2, %c0_3] : memref<16x256xf32, #tpu.memory_space<vmem>>, vector<16x256xf32>
    %cst = arith.constant dense<0.000000e+00> : vector<8x256xf32>
    %5 = tpu.matmul %3, %4, %cst {dimension_numbers = #tpu.dot_dimension_numbers<[1], [0], [0], [1], [0, 0, 1, 1], [], []>} : vector<8x16xf32>, vector<16x256xf32>, vector<8x256xf32> -> vector<8x256xf32>
    %c0_4 = arith.constant 0 : index
    %c0_5 = arith.constant 0 : index
    %6 = vector.load %arg5[%c0_4, %c0_5] : memref<1x256xf32, #tpu.memory_space<vmem>>, vector<1x256xf32>
    %7 = vector.broadcast %6 : vector<1x256xf32> to vector<8x256xf32>
    %8 = arith.addf %5, %7 : vector<8x256xf32>
    %c0_6 = arith.constant 0 : index
    %c0_7 = arith.constant 0 : index
    %9 = vector.load %arg4[%c0_6, %c0_7] : memref<128x256xf32, #tpu.memory_space<vmem>>, vector<128x256xf32>
    %c0_8 = arith.constant 0 : index
    %c0_9 = arith.constant 0 : index
    %10 = vector.load %arg9[%c0_8, %c0_9] : memref<8x128xf32, #tpu.memory_space<vmem>>, vector<8x128xf32>
    %cst_10 = arith.constant dense<0.000000e+00> : vector<8x256xf32>
    %11 = tpu.matmul %10, %9, %cst_10 {dimension_numbers = #tpu.dot_dimension_numbers<[1], [0], [0], [1], [0, 0, 1, 1], [], []>} : vector<8x128xf32>, vector<128x256xf32>, vector<8x256xf32> -> vector<8x256xf32>
    %12 = arith.addf %8, %11 : vector<8x256xf32>
    %13 = vector.extract_strided_slice %12 {offsets = [0, 0], sizes = [8, 128], strides = [1, 1]} : vector<8x256xf32> to vector<8x128xf32>
    %14 = arith.negf %13 : vector<8x128xf32>
    %15 = math.exp %14 : vector<8x128xf32>
    %cst_11 = arith.constant 1.000000e+00 : f32
    %16 = vector.broadcast %cst_11 : f32 to vector<8x128xf32>
    %17 = arith.addf %16, %15 : vector<8x128xf32>
    %18 = arith.divf %16, %17 : vector<8x128xf32>
    %19 = vector.extract_strided_slice %12 {offsets = [0, 128], sizes = [8, 128], strides = [1, 1]} : vector<8x256xf32> to vector<8x128xf32>
    %20 = math.tanh %19 : vector<8x128xf32>
    %cst_12 = arith.constant 1.000000e+00 : f32
    %21 = vector.broadcast %cst_12 : f32 to vector<8x128xf32>
    %22 = arith.subf %21, %18 : vector<8x128xf32>
    %23 = arith.mulf %22, %10 : vector<8x128xf32>
    %24 = arith.mulf %18, %20 : vector<8x128xf32>
    %25 = arith.addf %23, %24 : vector<8x128xf32>
    %c0_13 = arith.constant 0 : index
    %c0_14 = arith.constant 0 : index
    %26 = vector.load %arg9[%c0_13, %c0_14] : memref<8x128xf32, #tpu.memory_space<vmem>>, vector<8x128xf32>
    tpu.vector_store %arg9[%c0_13, %c0_14], %25 {strides = array<i32>} : memref<8x128xf32, #tpu.memory_space<vmem>>, vector<8x128xf32>,
    %c0_15 = arith.constant 0 : index
    %c0_16 = arith.constant 0 : index
    %27 = vector.load %arg6[%c0_15, %c0_16] : memref<128x128xf32, #tpu.memory_space<vmem>>, vector<128x128xf32>
    %cst_17 = arith.constant dense<0.000000e+00> : vector<8x128xf32>
    %28 = tpu.matmul %25, %27, %cst_17 {dimension_numbers = #tpu.dot_dimension_numbers<[1], [0], [0], [1], [0, 0, 1, 1], [], []>} : vector<8x128xf32>, vector<128x128xf32>, vector<8x128xf32> -> vector<8x128xf32>
    %c0_18 = arith.constant 0 : index
    %c0_19 = arith.constant 0 : index
    %29 = vector.load %arg7[%c0_18, %c0_19] : memref<1x128xf32, #tpu.memory_space<vmem>>, vector<1x128xf32>
    %30 = vector.broadcast %29 : vector<1x128xf32> to vector<8x128xf32>
    %31 = arith.addf %28, %30 : vector<8x128xf32>
    %cst_20 = arith.constant dense<0xFF800000> : vector<8xf32>
    %32 = vector.multi_reduction <maximumf>, %31, %cst_20 [1] : vector<8x128xf32> to vector<8xf32>
    %33 = vector.shape_cast %32 : vector<8xf32> to vector<8x1xf32>
    %34 = vector.broadcast %33 : vector<8x1xf32> to vector<8x128xf32>
    %35 = arith.subf %31, %34 : vector<8x128xf32>
    %36 = math.exp %35 : vector<8x128xf32>
    %cst_21 = arith.constant dense<0.000000e+00> : vector<8xf32>
    %37 = vector.multi_reduction <add>, %36, %cst_21 [1] : vector<8x128xf32> to vector<8xf32>
    %38 = vector.shape_cast %37 : vector<8xf32> to vector<8x1xf32>
    %39 = math.log %38 : vector<8x1xf32>
    %40 = vector.broadcast %39 : vector<8x1xf32> to vector<8x128xf32>
    %41 = arith.subf %35, %40 : vector<8x128xf32>
    %c0_22 = arith.constant 0 : index
    %c0_23 = arith.constant 0 : index
    %42 = vector.load %arg8[%c0_22, %c0_23] : memref<8x128xf32, #tpu.memory_space<vmem>>, vector<8x128xf32>
    tpu.vector_store %arg8[%c0_22, %c0_23], %41 {strides = array<i32>} : memref<8x128xf32, #tpu.memory_space<vmem>>, vector<8x128xf32>,
    return
  }
  func.func @transform_0(%arg0: i32) -> (i32, i32) {
    %c0_i32 = arith.constant 0 : i32
    %c0_i32_0 = arith.constant 0 : i32
    return %arg0, %c0_i32 : i32, i32
  }
  func.func @transform_1(%arg0: i32) -> (i32, i32) {
    %c0_i32 = arith.constant 0 : i32
    %c0_i32_0 = arith.constant 0 : i32
    %c0_i32_1 = arith.constant 0 : i32
    return %c0_i32, %c0_i32_0 : i32, i32
  }
  func.func @transform_2(%arg0: i32) -> (i32, i32) {
    %c0_i32 = arith.constant 0 : i32
    %c0_i32_0 = arith.constant 0 : i32
    %c0_i32_1 = arith.constant 0 : i32
    return %c0_i32, %c0_i32_0 : i32, i32
  }
  func.func @transform_3(%arg0: i32) -> (i32, i32) {
    %c0_i32 = arith.constant 0 : i32
    %c0_i32_0 = arith.constant 0 : i32
    %c0_i32_1 = arith.constant 0 : i32
    return %c0_i32, %c0_i32_0 : i32, i32
  }
  func.func @transform_4(%arg0: i32) -> (i32, i32) {
    %c0_i32 = arith.constant 0 : i32
    %c0_i32_0 = arith.constant 0 : i32
    %c0_i32_1 = arith.constant 0 : i32
    return %c0_i32, %c0_i32_0 : i32, i32
  }
  func.func @transform_5(%arg0: i32) -> (i32, i32) {
    %c0_i32 = arith.constant 0 : i32
    %c0_i32_0 = arith.constant 0 : i32
    %c0_i32_1 = arith.constant 0 : i32
    return %c0_i32, %c0_i32_0 : i32, i32
  }
  func.func @transform_6(%arg0: i32) -> (i32, i32) {
    %c0_i32 = arith.constant 0 : i32
    %c0_i32_0 = arith.constant 0 : i32
    %c0_i32_1 = arith.constant 0 : i32
    return %c0_i32, %c0_i32_0 : i32, i32
  }
  func.func @transform_7(%arg0: i32) -> (i32, i32) {
    %c0_i32 = arith.constant 0 : i32
    %c0_i32_0 = arith.constant 0 : i32
    return %arg0, %c0_i32 : i32, i32
  }
  func.func @transform_8(%arg0: i32) -> (i32, i32) {
    %c0_i32 = arith.constant 0 : i32
    %c0_i32_0 = arith.constant 0 : i32
    %c0_i32_1 = arith.constant 0 : i32
    return %c0_i32, %c0_i32_0 : i32, i32
  }
}

</mosaic_0001>

<llo_original>
// kernel: gru_forward_sequence.1
$region0: #{gru_forward_sequence.1}
  #allocation0 [shape = 'u32[]', space=smem, size = 0x4, offset = 0x4, fixed_abs, tag = 'smem constant byte address 0x4 - core index']
  #allocation1 [shape = 'u32[144,128]{1,0:T(1,128)}', space=vmem, size = 0x12000, scoped, tag = 'internal scratch']
  %s0 = inlined_call_operand.vmem [shape: f32[8,16], index: 0, kind: input, shape index: {}]
  %s1 = inlined_call_operand.vmem [shape: f32[8,128], index: 1, kind: input, shape index: {}]
  %s2 = inlined_call_operand.vmem [shape: f32[16,256], index: 2, kind: input, shape index: {}]
  %s3 = inlined_call_operand.vmem [shape: f32[128,256], index: 3, kind: input, shape index: {}]
  %s4 = inlined_call_operand.vmem [shape: f32[1,256], index: 4, kind: input, shape index: {}]
  %s5 = inlined_call_operand.vmem [shape: f32[128,128], index: 5, kind: input, shape index: {}]
  %s6 = inlined_call_operand.vmem [shape: f32[1,128], index: 6, kind: input, shape index: {}]
  %s7 = inlined_call_operand.hbm [shape: f32[8,128], index: 7, kind: output, shape index: {0}]
  %s8 = inlined_call_operand.hbm [shape: f32[8,128], index: 8, kind: output, shape index: {1}]
  %9 = xla_tuple %s7, %s8
  %s10 = sld [smem:[#allocation0]]
  $region50: #{gru_forward_sequence.1} parent=0
    _
  %s12 = ssub.s32 1, %s10
  %s13 = scalar_select 0, %s12, %s10
  $region1: #{gru_forward_sequence.1} parent=0
    #allocation2 [shape = 'u8[4096]{0}', space=vmem, size = 0x1000, scoped, tag = 'output window, operand 0, single buffered']
    #allocation3 [shape = 's32[1]{0}', space=sflag, size = 0x4, scoped, tag = 'scoped memory for gru_forward_sequence.1']
    #allocation4 [shape = 'u8[4096]{0}', space=vmem, size = 0x1000, scoped, tag = 'output window, operand 1, single buffered']
    #allocation5 [shape = 's32[1]{0}', space=sflag, size = 0x4, scoped, tag = 'scoped memory for gru_forward_sequence.1']
    %14 = vsyncpa [#allocation3], 0
    %15 = vsyncpa [#allocation5], 0
    // Predicated region
    $region2: #{gru_forward_sequence.1} parent=1 // pred_check
      _
    $region3: #{gru_forward_sequence.1} parent=1 // pred_check_branch
      %17 = sbr.rel (0) target = $region5
    $region4: #{gru_forward_sequence.1} parent=1 // pred_region
      _
    $region5: #{gru_forward_sequence.1} parent=1 // pred_fallthru
      _
    // Predicated region
    $region6: #{gru_forward_sequence.1} parent=1 // pred_check
      _
    $region7: #{gru_forward_sequence.1} parent=1 // pred_check_branch
      %19 = sbr.rel (0) target = $region9
    $region8: #{gru_forward_sequence.1} parent=1 // pred_region
      _
    $region9: #{gru_forward_sequence.1} parent=1 // pred_fallthru
      _
    // Predicated region
    $region10: #{gru_forward_sequence.1} parent=1 // pred_check
      _
    $region11: #{gru_forward_sequence.1} parent=1 // pred_check_branch
      %21 = sbr.rel (0) target = $region13
    $region12: #{gru_forward_sequence.1} parent=1 // pred_region
      _
    $region13: #{gru_forward_sequence.1} parent=1 // pred_fallthru
      _
    // Predicated region
    $region14: #{gru_forward_sequence.1} parent=1 // pred_check
      _
    $region15: #{gru_forward_sequence.1} parent=1 // pred_check_branch
      %23 = sbr.rel (0) target = $region17
    $region16: #{gru_forward_sequence.1} parent=1 // pred_region
      _
    $region17: #{gru_forward_sequence.1} parent=1 // pred_fallthru
      _
    // Predicated region
    $region18: #{gru_forward_sequence.1} parent=1 // pred_check
      _
    $region19: #{gru_forward_sequence.1} parent=1 // pred_check_branch
      %25 = sbr.rel (0) target = $region21
    $region20: #{gru_forward_sequence.1} parent=1 // pred_region
      _
    $region21: #{gru_forward_sequence.1} parent=1 // pred_fallthru
      _
    // Predicated region
    $region22: #{gru_forward_sequence.1} parent=1 // pred_check
      _
    $region23: #{gru_forward_sequence.1} parent=1 // pred_check_branch
      %27 = sbr.rel (0) target = $region25
    $region24: #{gru_forward_sequence.1} parent=1 // pred_region
      _
    $region25: #{gru_forward_sequence.1} parent=1 // pred_fallthru
      _
    // Predicated region
    $region26: #{gru_forward_sequence.1} parent=1 // pred_check
      _
    $region27: #{gru_forward_sequence.1} parent=1 // pred_check_branch
      %29 = sbr.rel (0) target = $region29
    $region28: #{gru_forward_sequence.1} parent=1 // pred_region
      _
    $region29: #{gru_forward_sequence.1} parent=1 // pred_fallthru
      _
    %p30 = scmp.eq.s32.totalorder 0, 0
    // Predicated region
    $region30: #{gru_forward_sequence.1} parent=1 // pred_check
      %p31 = pneg %p30
    $region31: #{gru_forward_sequence.1} parent=1 // pred_check_branch
      %33 = sbr.rel (%p31) target = $region33
    $region32: #{gru_forward_sequence.1} parent=1 // pred_region
      %v34 = vld [vmem:[%s1] sm:$0xff]
      %35 = vst [vmem:[#allocation4] sm:$0xff] %v34
    $region33: #{gru_forward_sequence.1} parent=1 // pred_fallthru
      _
    %v36 = vld [vmem:[%s0] sm:$0xff]
    %v37 = vld [vmem:[%s2] sm:$0xff]
    %v38 = vld [vmem:[%s2 + $0x8] sm:$0xff]
    %v39 = vld [vmem:[%s2 + $0x10] sm:$0xff]
    %v40 = vld [vmem:[%s2 + $0x18] sm:$0xff]
    %v41 = vld [vmem:[%s4] sm:$0x3]
    %v43 = vlaneseq
    %v44 = vshrl.u32 %v43, 7
    %v45 = vsub.s32 0, %v44
    %v46 = vrot.slane %v41, %v45
    %v47 = vlaneseq
    %v48 = vshrl.u32 %v47, 7
    %v49 = vsub.s32 1, %v48
    %v50 = vrot.slane %v41, %v49
    %vm53 = vcmask 130048
    %v55 = vsel %vm53, %v36, 0
    %57 = vmatprep.subr.mxu0 %v38
    %58 = vmatpush1.msra.mxu0 %v37
    %59 = vmatprep.subr.mxu0 %v40
    %60 = vmatpush1.msra.mxu0 %v39
    %61 = vmatprep.subr.mxu0 0.0
    %62 = vmatpush1.msra.mxu0 0.0
    %63 = vmatprep.subr.mxu0 0.0
    %64 = vmatpush1.msra.mxu0 0.0
    %65 = vmatprep.subr.mxu0 0.0
    %66 = vmatpush1.msra.mxu0 0.0
    %67 = vmatprep.subr.mxu0 0.0
    %68 = vmatpush1.msra.mxu0 0.0
    %69 = vmatprep.subr.mxu0 0.0
    %70 = vmatpush1.msra.mxu0 0.0
    %71 = vmatprep.subr.mxu0 0.0
    %72 = vmatpush1.msra.mxu0 0.0
    %73 = vmatprep.subr.mxu0 0.0
    %74 = vmatpush1.msra.mxu0 0.0
    %75 = vmatprep.subr.mxu0 0.0
    %76 = vmatpush1.msra.mxu0 0.0
    %77 = vmatprep.subr.mxu0 0.0
    %78 = vmatpush1.msra.mxu0 0.0
    %79 = vmatprep.subr.mxu0 0.0
    %80 = vmatpush1.msra.mxu0 0.0
    %81 = vmatprep.subr.mxu0 0.0
    %82 = vmatpush1.msra.mxu0 0.0
    %83 = vmatprep.subr.mxu0 0.0
    %84 = vmatpush1.msra.mxu0 0.0
    %85 = vmatprep.subr.mxu0 0.0
    %86 = vmatpush1.msra.mxu0 0.0
    %87 = vmatprep.subr.mxu0 0.0
    %88 = vmatpush1.msra.mxu0 0.0
    %89 = vmatprep.subr.mxu0 0.0
    %90 = vmatpush1.msra.mxu0 0.0
    %91 = vmatprep.subr.mxu0 0.0
    %92 = vmatpush1.msra.mxu0 0.0
    %93 = vmatprep.subr.mxu0 0.0
    %94 = vmatpush1.msra.mxu0 0.0
    %95 = vmatprep.subr.mxu0 0.0
    %96 = vmatpush1.msra.mxu0 0.0
    %97 = vmatprep.subr.mxu0 0.0
    %98 = vmatpush1.msra.mxu0 0.0
    %99 = vmatprep.subr.mxu0 0.0
    %100 = vmatpush1.msra.mxu0 0.0
    %101 = vmatprep.subr.mxu0 0.0
    %102 = vmatpush1.msra.mxu0 0.0
    %103 = vmatprep.subr.mxu0 0.0
    %104 = vmatpush1.msra.mxu0 0.0
    %105 = vmatprep.subr.mxu0 0.0
    %106 = vmatpush1.msra.mxu0 0.0
    %107 = vmatprep.subr.mxu0 0.0
    %108 = vmatpush1.msra.mxu0 0.0
    %109 = vmatprep.subr.mxu0 0.0
    %110 = vmatpush1.msra.mxu0 0.0
    %111 = vmatprep.subr.mxu0 0.0
    %112 = vmatpush1.msra.mxu0 0.0
    %113 = vmatprep.subr.mxu0 0.0
    %114 = vmatpush1.msra.mxu0 0.0
    %115 = vmatprep.subr.mxu0 0.0
    %116 = vmatpush1.msra.mxu0 0.0
    %117 = vmatprep.subr.mxu0 0.0
    %118 = vmatpush1.msra.mxu0 0.0
    %119 = vmatprep.subr.mxu0 0.0
    %120 = vmatpush1.msra.mxu0 0.0
    %121 = vmatprep.mubr.f32.mxu0 0.0
    %122 = vmatmul.mubr.f32.gmra.mrb[0].mxu0 %v55
    %v123 = vpop.f32.mrb[0].mxu0
    %v124 = vadd.f32 %v46, %v123
    %v125 = vpop.f32.mrb[0].mxu0
    %v126 = vadd.f32 %v50, %v125
    %127 = vdwg.mxu0
    %v128 = vld [vmem:[%s3] sm:$0xff]
    %v129 = vld [vmem:[%s3 + $0x8] sm:$0xff]
    %v130 = vld [vmem:[%s3 + $0x10] sm:$0xff]
    %v131 = vld [vmem:[%s3 + $0x18] sm:$0xff]
    %v132 = vld [vmem:[%s3 + $0x20] sm:$0xff]
    %v133 = vld [vmem:[%s3 + $0x28] sm:$0xff]
    %v134 = vld [vmem:[%s3 + $0x30] sm:$0xff]
    %v135 = vld [vmem:[%s3 + $0x38] sm:$0xff]
    %v136 = vld [vmem:[%s3 + $0x40] sm:$0xff]
    %v137 = vld [vmem:[%s3 + $0x48] sm:$0xff]
    %v138 = vld [vmem:[%s3 + $0x50] sm:$0xff]
    %v139 = vld [vmem:[%s3 + $0x58] sm:$0xff]
    %v140 = vld [vmem:[%s3 + $0x60] sm:$0xff]
    %v141 = vld [vmem:[%s3 + $0x68] sm:$0xff]
    %v142 = vld [vmem:[%s3 + $0x70] sm:$0xff]
    %v143 = vld [vmem:[%s3 + $0x78] sm:$0xff]
    %v144 = vld [vmem:[%s3 + $0x80] sm:$0xff]
    %v145 = vld [vmem:[%s3 + $0x88] sm:$0xff]
    %v146 = vld [vmem:[%s3 + $0x90] sm:$0xff]
    %v147 = vld [vmem:[%s3 + $0x98] sm:$0xff]
    %v148 = vld [vmem:[%s3 + $0xa0] sm:$0xff]
    %v149 = vld [vmem:[%s3 + $0xa8] sm:$0xff]
    %v150 = vld [vmem:[%s3 + $0xb0] sm:$0xff]
    %v151 = vld [vmem:[%s3 + $0xb8] sm:$0xff]
    %v152 = vld [vmem:[%s3 + $0xc0] sm:$0xff]
    %v153 = vld [vmem:[%s3 + $0xc8] sm:$0xff]
    %v154 = vld [vmem:[%s3 + $0xd0] sm:$0xff]
    %v155 = vld [vmem:[%s3 + $0xd8] sm:$0xff]
    %v156 = vld [vmem:[%s3 + $0xe0] sm:$0xff]
    %v157 = vld [vmem:[%s3 + $0xe8] sm:$0xff]
    %v158 = vld [vmem:[%s3 + $0xf0] sm:$0xff]
    %v159 = vld [vmem:[%s3 + $0xf8] sm:$0xff]
    %v160 = vld [vmem:[#allocation4] sm:$0xff]
    %161 = vmatprep.subr.mxu0 %v129
    %162 = vmatpush1.msra.mxu0 %v128
    %163 = vmatprep.subr.mxu0 %v131
    %164 = vmatpush1.msra.mxu0 %v130
    %165 = vmatprep.subr.mxu0 %v133
    %166 = vmatpush1.msra.mxu0 %v132
    %167 = vmatprep.subr.mxu0 %v135
    %168 = vmatpush1.msra.mxu0 %v134
    %169 = vmatprep.subr.mxu0 %v137
    %170 = vmatpush1.msra.mxu0 %v136
    %171 = vmatprep.subr.mxu0 %v139
    %172 = vmatpush1.msra.mxu0 %v138
    %173 = vmatprep.subr.mxu0 %v141
    %174 = vmatpush1.msra.mxu0 %v140
    %175 = vmatprep.subr.mxu0 %v143
    %176 = vmatpush1.msra.mxu0 %v142
    %177 = vmatprep.subr.mxu0 %v145
    %178 = vmatpush1.msra.mxu0 %v144
    %179 = vmatprep.subr.mxu0 %v147
    %180 = vmatpush1.msra.mxu0 %v146
    %181 = vmatprep.subr.mxu0 %v149
    %182 = vmatpush1.msra.mxu0 %v148
    %183 = vmatprep.subr.mxu0 %v151
    %184 = vmatpush1.msra.mxu0 %v150
    %185 = vmatprep.subr.mxu0 %v153
    %186 = vmatpush1.msra.mxu0 %v152
    %187 = vmatprep.subr.mxu0 %v155
    %188 = vmatpush1.msra.mxu0 %v154
    %189 = vmatprep.subr.mxu0 %v157
    %190 = vmatpush1.msra.mxu0 %v156
    %191 = vmatprep.subr.mxu0 %v159
    %192 = vmatpush1.msra.mxu0 %v158
    %193 = vmatprep.subr.mxu0 0.0
    %194 = vmatpush1.msra.mxu0 0.0
    %195 = vmatprep.subr.mxu0 0.0
    %196 = vmatpush1.msra.mxu0 0.0
    %197 = vmatprep.subr.mxu0 0.0
    %198 = vmatpush1.msra.mxu0 0.0
    %199 = vmatprep.subr.mxu0 0.0
    %200 = vmatpush1.msra.mxu0 0.0
    %201 = vmatprep.subr.mxu0 0.0
    %202 = vmatpush1.msra.mxu0 0.0
    %203 = vmatprep.subr.mxu0 0.0
    %204 = vmatpush1.msra.mxu0 0.0
    %205 = vmatprep.subr.mxu0 0.0
    %206 = vmatpush1.msra.mxu0 0.0
    %207 = vmatprep.subr.mxu0 0.0
    %208 = vmatpush1.msra.mxu0 0.0
    %209 = vmatprep.subr.mxu0 0.0
    %210 = vmatpush1.msra.mxu0 0.0
    %211 = vmatprep.subr.mxu0 0.0
    %212 = vmatpush1.msra.mxu0 0.0
    %213 = vmatprep.subr.mxu0 0.0
    %214 = vmatpush1.msra.mxu0 0.0
    %215 = vmatprep.subr.mxu0 0.0
    %216 = vmatpush1.msra.mxu0 0.0
    %217 = vmatprep.subr.mxu0 0.0
    %218 = vmatpush1.msra.mxu0 0.0
    %219 = vmatprep.subr.mxu0 0.0
    %220 = vmatpush1.msra.mxu0 0.0
    %221 = vmatprep.subr.mxu0 0.0
    %222 = vmatpush1.msra.mxu0 0.0
    %223 = vmatprep.subr.mxu0 0.0
    %224 = vmatpush1.msra.mxu0 0.0
    %225 = vmatprep.mubr.f32.mxu0 0.0
    %226 = vmatmul.mubr.f32.gmra.mrb[0].mxu0 %v160
    %v227 = vpop.f32.mrb[0].mxu0
    %v228 = vadd.f32 0.0, %v227
    %v229 = vpop.f32.mrb[0].mxu0
    %v230 = vadd.f32 0.0, %v229
    %231 = vdwg.mxu0
    %v232 = vadd.f32 %v124, %v228
    %v233 = vadd.f32 %v126, %v230
    %v234 = vxor.u32 %v232, 2147483648
    %v235 = vmul.f32 %v234, 1.442695
    %v236 = vpow.pop %v235
    %v237 = vadd.f32 %v236, 1.0
    %v238 = vrcp.pop %v237
    %v239 = vmul.f32 1.0, %v238
    %v240 = vtanh.pop %v233
    %v241 = vsub.f32 1.0, %v239
    %v242 = vmul.f32 %v241, %v160
    %v243 = vmul.f32 %v239, %v240
    %v244 = vadd.f32 %v242, %v243
    %245 = vst [vmem:[#allocation4] sm:$0xff] %v244
    %v246 = vld [vmem:[%s5] sm:$0xff]
    %v247 = vld [vmem:[%s5 + $0x8] sm:$0xff]
    %v248 = vld [vmem:[%s5 + $0x10] sm:$0xff]
    %v249 = vld [vmem:[%s5 + $0x18] sm:$0xff]
    %v250 = vld [vmem:[%s5 + $0x20] sm:$0xff]
    %v251 = vld [vmem:[%s5 + $0x28] sm:$0xff]
    %v252 = vld [vmem:[%s5 + $0x30] sm:$0xff]
    %v253 = vld [vmem:[%s5 + $0x38] sm:$0xff]
    %v254 = vld [vmem:[%s5 + $0x40] sm:$0xff]
    %v255 = vld [vmem:[%s5 + $0x48] sm:$0xff]
    %v256 = vld [vmem:[%s5 + $0x50] sm:$0xff]
    %v257 = vld [vmem:[%s5 + $0x58] sm:$0xff]
    %v258 = vld [vmem:[%s5 + $0x60] sm:$0xff]
    %v259 = vld [vmem:[%s5 + $0x68] sm:$0xff]
    %v260 = vld [vmem:[%s5 + $0x70] sm:$0xff]
    %v261 = vld [vmem:[%s5 + $0x78] sm:$0xff]
    %v262 = vld [vmem:[%s6] sm:$0x1]
    %v264 = vlaneseq
    %v265 = vshrl.u32 %v264, 7
    %v266 = vsub.s32 0, %v265
    %v267 = vrot.slane %v262, %v266
    %269 = vmatprep.subr.mxu0 0.0
    %270 = vmatpush1.msra.mxu0 %v246
    %271 = vmatprep.subr.mxu0 0.0
    %272 = vmatpush1.msra.mxu0 %v247
    %273 = vmatprep.subr.mxu0 0.0
    %274 = vmatpush1.msra.mxu0 %v248
    %275 = vmatprep.subr.mxu0 0.0
    %276 = vmatpush1.msra.mxu0 %v249
    %277 = vmatprep.subr.mxu0 0.0
    %278 = vmatpush1.msra.mxu0 %v250
    %279 = vmatprep.subr.mxu0 0.0
    %280 = vmatpush1.msra.mxu0 %v251
    %281 = vmatprep.subr.mxu0 0.0
    %282 = vmatpush1.msra.mxu0 %v252
    %283 = vmatprep.subr.mxu0 0.0
    %284 = vmatpush1.msra.mxu0 %v253
    %285 = vmatprep.subr.mxu0 0.0
    %286 = vmatpush1.msra.mxu0 %v254
    %287 = vmatprep.subr.mxu0 0.0
    %288 = vmatpush1.msra.mxu0 %v255
    %289 = vmatprep.subr.mxu0 0.0
    %290 = vmatpush1.msra.mxu0 %v256
    %291 = vmatprep.subr.mxu0 0.0
    %292 = vmatpush1.msra.mxu0 %v257
    %293 = vmatprep.subr.mxu0 0.0
    %294 = vmatpush1.msra.mxu0 %v258
    %295 = vmatprep.subr.mxu0 0.0
    %296 = vmatpush1.msra.mxu0 %v259
    %297 = vmatprep.subr.mxu0 0.0
    %298 = vmatpush1.msra.mxu0 %v260
    %299 = vmatprep.subr.mxu0 0.0
    %300 = vmatpush1.msra.mxu0 %v261
    %301 = vmatprep.subr.mxu0 0.0
    %302 = vmatpush1.msra.mxu0 0.0
    %303 = vmatprep.subr.mxu0 0.0
    %304 = vmatpush1.msra.mxu0 0.0
    %305 = vmatprep.subr.mxu0 0.0
    %306 = vmatpush1.msra.mxu0 0.0
    %307 = vmatprep.subr.mxu0 0.0
    %308 = vmatpush1.msra.mxu0 0.0
    %309 = vmatprep.subr.mxu0 0.0
    %310 = vmatpush1.msra.mxu0 0.0
    %311 = vmatprep.subr.mxu0 0.0
    %312 = vmatpush1.msra.mxu0 0.0
    %313 = vmatprep.subr.mxu0 0.0
    %314 = vmatpush1.msra.mxu0 0.0
    %315 = vmatprep.subr.mxu0 0.0
    %316 = vmatpush1.msra.mxu0 0.0
    %317 = vmatprep.subr.mxu0 0.0
    %318 = vmatpush1.msra.mxu0 0.0
    %319 = vmatprep.subr.mxu0 0.0
    %320 = vmatpush1.msra.mxu0 0.0
    %321 = vmatprep.subr.mxu0 0.0
    %322 = vmatpush1.msra.mxu0 0.0
    %323 = vmatprep.subr.mxu0 0.0
    %324 = vmatpush1.msra.mxu0 0.0
    %325 = vmatprep.subr.mxu0 0.0
    %326 = vmatpush1.msra.mxu0 0.0
    %327 = vmatprep.subr.mxu0 0.0
    %328 = vmatpush1.msra.mxu0 0.0
    %329 = vmatprep.subr.mxu0 0.0
    %330 = vmatpush1.msra.mxu0 0.0
    %331 = vmatprep.subr.mxu0 0.0
    %332 = vmatpush1.msra.mxu0 0.0
    %333 = vmatprep.mubr.f32.mxu0 0.0
    %334 = vmatmul.mubr.f32.gmra.mrb[0].mxu0 %v244
    %v335 = vpop.f32.mrb[0].mxu0
    %v336 = vadd.f32 %v267, %v335
    %v337 = vpop.f32.mrb[0].mxu0
    %338 = vdwg.mxu0
    %339 = vmax.xlane.f32.xlu0 %v336
    %v340 = vpop.xlane.xlu0 %339
    %v341 = vsub.f32 %v336, %v340
    %v342 = vmul.f32 %v341, 1.442695
    %v343 = vpow.pop %v342
    %344 = vadd.xlane.f32.xlu0 %v343
    %v345 = vpop.xlane.xlu0 %344
    %v346 = vlog2.pop %v345
    %v347 = vmul.f32 %v346, 0.6931472
    %v348 = vsub.f32 %v341, %v347
    %349 = vst [vmem:[#allocation2] sm:$0xff] %v348
    // Predicated region
    $region34: #{gru_forward_sequence.1} parent=1 // pred_check
      _
    $region35: #{gru_forward_sequence.1} parent=1 // pred_check_branch
      %351 = sbr.rel (0) target = $region37
    $region36: #{gru_forward_sequence.1} parent=1 // pred_region
      %s353 = ssub.s32 128, 128
      %354 = vsyncadd [#allocation3], %s353
      %s356 = sshll.u32 [#allocation2], 4
      %s357 = int_to_ptr.vmem [resolvable:$true] %s356
      %359 = dma.vmem_to_hbm [thread:$0]  %s357, 128, %s7, [#allocation3]
    $region37: #{gru_forward_sequence.1} parent=1 // pred_fallthru
      _
    // Predicated region
    $region38: #{gru_forward_sequence.1} parent=1 // pred_check
      _
    $region39: #{gru_forward_sequence.1} parent=1 // pred_check_branch
      %361 = sbr.rel (0) target = $region41
    $region40: #{gru_forward_sequence.1} parent=1 // pred_region
      %s363 = ssub.s32 128, 128
      %364 = vsyncadd [#allocation5], %s363
      %s366 = sshll.u32 [#allocation4], 4
      %s367 = int_to_ptr.vmem [resolvable:$true] %s366
      %369 = dma.vmem_to_hbm [thread:$0]  %s367, 128, %s8, [#allocation5]
    $region41: #{gru_forward_sequence.1} parent=1 // pred_fallthru
      _
    // Predicated region
    $region42: #{gru_forward_sequence.1} parent=1 // pred_check
      _
    $region43: #{gru_forward_sequence.1} parent=1 // pred_check_branch
      %371 = sbr.rel (0) target = $region45
    $region44: #{gru_forward_sequence.1} parent=1 // pred_region
      %372 = dma.done [#allocation3], 128
    $region45: #{gru_forward_sequence.1} parent=1 // pred_fallthru
      _
    // Predicated region
    $region46: #{gru_forward_sequence.1} parent=1 // pred_check
      _
    $region47: #{gru_forward_sequence.1} parent=1 // pred_check_branch
      %374 = sbr.rel (0) target = $region49
    $region48: #{gru_forward_sequence.1} parent=1 // pred_region
      %375 = dma.done [#allocation5], 128
    $region49: #{gru_forward_sequence.1} parent=1 // pred_fallthru
      _
    %376 = vsyncpa [#allocation3], 1
    %377 = vsyncpa [#allocation5], 1

</llo_original>
